<compile_context>
chip_gen: v7x
topology: tpu7x:2x2x1
jax: 0.10.0
libtpu: 0.0.40
codegen_flags: <defaults>
</compile_context>

<pallas_src>
import functools

import jax
import jax.numpy as jnp
from jax import lax
from jax.experimental import pallas as pl
from jax.experimental.pallas import tpu as pltpu


def _deq_kernel(*refs, max_iter: int, tol: float, check_every: int,
                has_init: bool, m_valid: int, needs_mask: bool):
    """One M-tile of the DEQ forward, fully resident in VMEM.

    Layout inside the kernel is channels-first / lane-dense:
      x_ref  : (C, TILE_M)   input tile (channels on sublanes, M on lanes)
      z0_ref : (C, TILE_M)   optional initial point tile (only if has_init)
      wt_ref : (C, C)        W^T  (so  z @ W  becomes  W^T @ z_cm)
      b_ref  : (C, 1)        bias column (broadcast along lanes)
      z_out  : (C, TILE_M)   output tile  z = f(z*, x)
      nd_ref : (1, 2) SMEM   per-tile [num2, den2] residual sums-of-squares
    """
    if has_init:
        x_ref, z0_ref, wt_ref, b_ref, z_out_ref, nd_ref = refs
    else:
        x_ref, wt_ref, b_ref, z_out_ref, nd_ref = refs
        z0_ref = None

    _, tile_m = x_ref.shape

    wt = wt_ref[...]
    # Hoisted once per tile: x + b (broadcast along the lane axis).
    xb = x_ref[...] + b_ref[...]

    def f(z):
        # MXU matmul (N = TILE_M, lane-dense) + VPU add + EUP tanh, all f32.
        return jnp.tanh(jnp.dot(wt, z, preferred_element_type=jnp.float32) + xb)

    if has_init:
        f0 = f(z0_ref[...])
    else:
        # initial_point is None -> z0 == 0 -> W^T @ 0 == 0 -> f(0, x) = tanh(x + b)
        f0 = jnp.tanh(xb)

    # Mask for padded M lanes so they do not enter the stopping test / residual.
    if needs_mask:
        col = pl.program_id(0) * tile_m + lax.broadcasted_iota(
            jnp.int32, (1, tile_m), 1)
        lane_mask = (col < m_valid).astype(jnp.float32)
    else:
        lane_mask = None

    def _masked(a):
        return a if lane_mask is None else a * lane_mask

    tol2 = jnp.float32(tol * tol)
    eps2 = jnp.float32(1e-5 * 1e-5)
    k = check_every

    # Forward fixed-point iteration, residual checked every k iterations.
    # sqrt-free (slightly stricter) test:
    #   num2 < tol^2 * (eps^2 + den2)   =>   ||f(z)-z|| / (1e-5 + ||f(z)||) < tol
    def cond(carry):
        _, num2, den2, it = carry
        return jnp.logical_and(it < max_iter, num2 >= tol2 * (eps2 + den2))

    def body(carry):
        z, _, _, it = carry
        # (k-1) unconditional applications: no subtract / reduce / scalar hop.
        for _ in range(k - 1):
            z = f(z)
        z_new = f(z)
        d = _masked(z_new - z)
        zm = _masked(z_new)
        num2 = jnp.sum(d * d)
        den2 = jnp.sum(zm * zm)
        return z_new, num2, den2, it + k

    z_star, num2, den2, _ = lax.while_loop(
        cond, body,
        (f0, jnp.array(jnp.inf, jnp.float32), jnp.array(0.0, jnp.float32),
         jnp.array(0, jnp.int32)))

    # Final application outside the no-grad region: z = f(z*, x).
    z_out_ref[...] = f(z_star)

    # Per-tile residual pieces as SMEM scalars (no vreg selects / VMEM store).
    nd_ref[0, 0] = num2
    nd_ref[0, 1] = den2


def _num_tensorcores_per_chip() -> int:
    """2 TensorCores per chip on v7x; v5e/v6e have a single TC (grid = loop)."""
    try:
        kind = jax.devices()[0].device_kind.lower()
    except Exception:  # pragma: no cover - defensive
        return 1
    return 2 if "7" in kind else 1


def _pick_tile_m(mp: int, c: int, num_tc: int) -> int:
    """Generation-aware lane tile.

    Single-TC (v5e/v6e): one big 256-multiple tile (fewer grid steps, wider MXU N).
    2-TC (v7x): prefer >= 2 balanced tiles, but never below 512 lanes.
    Tile is capped so ~6 live (C, tile_m) f32 buffers stay under ~24 MiB
    (fits v7x's 64 MiB VMEM with headroom; v5e/v6e have 128 MiB).
    """
    budget = 24 * 1024 * 1024
    vmem_cap = max(128, (budget // (6 * c * 4)) // 128 * 128)
    cands = [t for t in (4096, 2048, 1024, 512, 256, 128)
             if t <= vmem_cap and mp % t == 0]
    if not cands:
        return 128
    if num_tc >= 2:
        good = [t for t in cands if t >= 512 and mp // t >= 2]
        even = [t for t in good if (mp // t) % 2 == 0]
        if even:
            return even[0]
        if good:
            return good[0]
    return cands[0]


def _pick_check_every(max_iter: int) -> int:
    """Residual-check stride (2..4) that divides max_iter so the cap is exact."""
    for k in (4, 3, 2):
        if max_iter >= k and max_iter % k == 0:
            return k
    return 1


def deq_fixed_point_exp(x_nchw, W, b, initial_point=None,
                        max_iter: int = 30, tol: float = 1e-4):
    """JAX/Pallas equivalent of DEQFixedPointExp.forward (forward values only)."""
    B, C, H, Wd = x_nchw.shape
    M = B * H * Wd

    # NCHW -> channels-first flattened, lane-dense layout [C, M].
    x_cm = jnp.transpose(x_nchw, (1, 0, 2, 3)).reshape(C, M).astype(jnp.float32)
    wt = jnp.asarray(W, jnp.float32).T            # f_cm(z) = tanh(W^T @ z + x + b)
    b_col = jnp.asarray(b, jnp.float32).reshape(C, 1)

    # Pad M to a lane multiple and tile it across a parallel grid axis.
    Mp = ((M + 127) // 128) * 128
    num_tc = _num_tensorcores_per_chip()
    tile_m = _pick_tile_m(Mp, C, num_tc)
    num_tiles = Mp // tile_m
    if Mp != M:
        x_cm = jnp.pad(x_cm, ((0, 0), (0, Mp - M)))

    has_init = initial_point is not None
    inputs = [x_cm]
    in_specs = [pl.BlockSpec((C, tile_m), lambda i: (0, i))]
    if has_init:
        z0_cm = jnp.transpose(jnp.asarray(initial_point, jnp.float32),
                              (1, 0, 2, 3)).reshape(C, M)
        if Mp != M:
            z0_cm = jnp.pad(z0_cm, ((0, 0), (0, Mp - M)))
        inputs.append(z0_cm)
        in_specs.append(pl.BlockSpec((C, tile_m), lambda i: (0, i)))
    inputs += [wt, b_col]
    in_specs += [pl.BlockSpec((C, C), lambda i: (0, 0)),
                 pl.BlockSpec((C, 1), lambda i: (0, 0))]

    kernel = functools.partial(
        _deq_kernel, max_iter=max_iter, tol=tol,
        check_every=_pick_check_every(max_iter),
        has_init=has_init, m_valid=M, needs_mask=(Mp != M))

    z_cm, nd = pl.pallas_call(
        kernel,
        out_shape=(
            jax.ShapeDtypeStruct((C, Mp), jnp.float32),
            jax.ShapeDtypeStruct((num_tiles, 2), jnp.float32),
        ),
        grid=(num_tiles,),
        in_specs=in_specs,
        out_specs=(
            pl.BlockSpec((C, tile_m), lambda i: (0, i)),
            pl.BlockSpec((1, 2), lambda i: (i, 0),
                         memory_space=pltpu.MemorySpace.SMEM),
        ),
        compiler_params=pltpu.CompilerParams(
            dimension_semantics=("parallel",),
            vmem_limit_bytes=32 * 1024 * 1024),
    )(*inputs)

    # [C, Mp] -> NCHW (dropping any M padding).
    z = z_cm[:, :M].reshape(C, B, H, Wd).transpose(1, 0, 2, 3)

    # Global relative residual reconstructed from per-tile sums of squares
    # (padded lanes are masked out inside the kernel).
    # TODO(synk): with per-tile early stopping this is the residual at each
    # tile's own stopping iteration (all < ~tol), not PyTorch's per-iteration
    # residual history; values agree to within ~tol. Residuals may also be
    # checked only every `check_every` iterations (never exceeding max_iter),
    # so the solver can run up to check_every-1 extra contraction steps.
    num2_tot = jnp.sum(nd[:, 0])
    den2_tot = jnp.sum(nd[:, 1])
    forward_res = jnp.sqrt(num2_tot) / (1e-5 + jnp.sqrt(den2_tot))
    return z, forward_res


def _reference_forward(x_nchw, W, b, max_iter, tol):
    """Pure-JAX reference of the module's forward (no early break needed)."""
    B, C, H, Wd = x_nchw.shape
    xf = jnp.transpose(x_nchw, (0, 2, 3, 1)).reshape(-1, C)

    def f(z):
        return jnp.tanh(z @ W + b + xf)

    z = f(jnp.zeros_like(xf))
    for _ in range(max_iter):
        z = f(z)
    z = f(z)
    return z.reshape(B, H, Wd, C).transpose(0, 3, 1, 2)


if __name__ == "__main__":
    # Small shapes consistent with the module's conv-style NCHW input.
    B, C, H, Wd = 2, 32, 16, 16

    key = jax.random.PRNGKey(0)
    kx, kw, kb = jax.random.split(key, 3)

    x = jax.random.normal(kx, (B, C, H, Wd), dtype=jnp.float32)
    # Contraction-friendly parameters (spectral norm << 1 so the iteration converges).
    W = (0.3 / jnp.sqrt(jnp.float32(C))) * jax.random.normal(
        kw, (C, C), dtype=jnp.float32)
    b = 0.05 * jax.random.normal(kb, (1, C), dtype=jnp.float32)

    z, forward_res = deq_fixed_point_exp(x, W, b, initial_point=None,
                                         max_iter=30, tol=1e-4)
    z = jax.block_until_ready(z)
    forward_res = jax.block_until_ready(forward_res)

    assert z.shape == (B, C, H, Wd)
    assert bool(jnp.all(jnp.isfinite(z)))
    assert bool(jnp.isfinite(forward_res))
    assert float(forward_res) < 1e-2  # solver actually converged

    z_ref = _reference_forward(x, W, b, max_iter=30, tol=1e-4)
    max_err = float(jnp.max(jnp.abs(z - z_ref)))
    assert max_err < 2e-3, f"max |z - z_ref| = {max_err}"

    # TODO(synk): the backward hook (implicit-function-theorem gradient solve)
    # is gradient-only machinery and is not part of the forward Pallas kernel.
    print("KERNEL_OK")
</pallas_src>

<mosaic_0001>
module attributes {stable_mosaic.version = 11 : i64} {
  func.func @_deq_kernel(%arg0: i32, %arg1: memref<32x512xf32, #tpu.memory_space<vmem>>, %arg2: memref<32x32xf32, #tpu.memory_space<vmem>>, %arg3: memref<32x1xf32, #tpu.memory_space<vmem>>, %arg4: memref<32x512xf32, #tpu.memory_space<vmem>>, %arg5: memref<1x2xf32, #tpu.memory_space<smem>>) attributes {dimension_semantics = [#tpu.dimension_semantics<parallel>], iteration_bounds = array<i64: 1>, scalar_prefetch = 0 : i64, scratch_operands = 0 : i64, tpu.core_type = #tpu.core_type<tc>, window_params = [{transform_indices = @transform_0, window_bounds = array<i64: 32, 512>}, {pipeline_mode = #tpu.pipeline_mode<synchronous>, transform_indices = @transform_1, window_bounds = array<i64: 32, 32>}, {pipeline_mode = #tpu.pipeline_mode<synchronous>, transform_indices = @transform_2, window_bounds = array<i64: 32, 1>}, {transform_indices = @transform_3, window_bounds = array<i64: 32, 512>}, {transform_indices = @transform_4, window_bounds = array<i64: 1, 2>}]} {
    %c0 = arith.constant 0 : index
    %c0_0 = arith.constant 0 : index
    %0 = vector.load %arg2[%c0, %c0_0] : memref<32x32xf32, #tpu.memory_space<vmem>>, vector<32x32xf32>
    %c0_1 = arith.constant 0 : index
    %c0_2 = arith.constant 0 : index
    %1 = vector.load %arg1[%c0_1, %c0_2] : memref<32x512xf32, #tpu.memory_space<vmem>>, vector<32x512xf32>
    %c0_3 = arith.constant 0 : index
    %c0_4 = arith.constant 0 : index
    %2 = vector.load %arg3[%c0_3, %c0_4] : memref<32x1xf32, #tpu.memory_space<vmem>>, vector<32x1xf32>
    %3 = vector.broadcast %2 : vector<32x1xf32> to vector<32x512xf32>
    %4 = arith.addf %1, %3 : vector<32x512xf32>
    %5 = math.tanh %4 : vector<32x512xf32>
    %cst = arith.constant 1.000000e-10 : f32
    %cst_5 = arith.constant 9.99999993E-9 : f32
    %cst_6 = arith.constant 0x7F800000 : f32
    %cst_7 = arith.constant 0.000000e+00 : f32
    %c0_i32 = arith.constant 0 : i32
    %6:4 = scf.while (%arg6 = %5, %arg7 = %cst_6, %arg8 = %cst_7, %arg9 = %c0_i32) : (vector<32x512xf32>, f32, f32, i32) -> (vector<32x512xf32>, f32, f32, i32) {
      %c30_i32 = arith.constant 30 : i32
      %13 = arith.cmpi slt, %arg9, %c30_i32 : i32
      %14 = arith.addf %cst, %arg8 : f32
      %15 = arith.mulf %cst_5, %14 : f32
      %16 = arith.cmpf oge, %arg7, %15 : f32
      %17 = arith.andi %13, %16 : i1
      scf.condition(%17) %arg6, %arg7, %arg8, %arg9 : vector<32x512xf32>, f32, f32, i32
    } do {
    ^bb0(%arg6: vector<32x512xf32>, %arg7: f32, %arg8: f32, %arg9: i32):
      %cst_14 = arith.constant dense<0.000000e+00> : vector<32x512xf32>
      %13 = tpu.matmul %0, %arg6, %cst_14 {dimension_numbers = #tpu.dot_dimension_numbers<[1], [0], [0], [1], [0, 0, 1, 1], [], []>} : vector<32x32xf32>, vector<32x512xf32>, vector<32x512xf32> -> vector<32x512xf32>
      %14 = arith.addf %13, %4 : vector<32x512xf32>
      %15 = math.tanh %14 : vector<32x512xf32>
      %cst_15 = arith.constant dense<0.000000e+00> : vector<32x512xf32>
      %16 = tpu.matmul %0, %15, %cst_15 {dimension_numbers = #tpu.dot_dimension_numbers<[1], [0], [0], [1], [0, 0, 1, 1], [], []>} : vector<32x32xf32>, vector<32x512xf32>, vector<32x512xf32> -> vector<32x512xf32>
      %17 = arith.addf %16, %4 : vector<32x512xf32>
      %18 = math.tanh %17 : vector<32x512xf32>
      %cst_16 = arith.constant dense<0.000000e+00> : vector<32x512xf32>
      %19 = tpu.matmul %0, %18, %cst_16 {dimension_numbers = #tpu.dot_dimension_numbers<[1], [0], [0], [1], [0, 0, 1, 1], [], []>} : vector<32x32xf32>, vector<32x512xf32>, vector<32x512xf32> -> vector<32x512xf32>
      %20 = arith.addf %19, %4 : vector<32x512xf32>
      %21 = math.tanh %20 : vector<32x512xf32>
      %22 = arith.subf %21, %18 : vector<32x512xf32>
      %23 = arith.mulf %22, %22 : vector<32x512xf32>
      %24 = vector.shape_cast %23 : vector<32x512xf32> to vector<1x32x512xf32>
      %cst_17 = arith.constant dense<0.000000e+00> : vector<1xf32>
      %25 = vector.multi_reduction <add>, %24, %cst_17 [1, 2] : vector<1x32x512xf32> to vector<1xf32>
      %26 = vector.shape_cast %25 : vector<1xf32> to vector<1x1x1xf32>
      %27 = vector.extract %26[0, 0, 0] : f32 from vector<1x1x1xf32>
      %28 = arith.mulf %21, %21 : vector<32x512xf32>
      %29 = vector.shape_cast %28 : vector<32x512xf32> to vector<1x32x512xf32>
      %cst_18 = arith.constant dense<0.000000e+00> : vector<1xf32>
      %30 = vector.multi_reduction <add>, %29, %cst_18 [1, 2] : vector<1x32x512xf32> to vector<1xf32>
      %31 = vector.shape_cast %30 : vector<1xf32> to vector<1x1x1xf32>
      %32 = vector.extract %31[0, 0, 0] : f32 from vector<1x1x1xf32>
      %c3_i32 = arith.constant 3 : i32
      %33 = arith.addi %arg9, %c3_i32 : i32
      scf.yield %21, %27, %32, %33 : vector<32x512xf32>, f32, f32, i32
    }
    %cst_8 = arith.constant dense<0.000000e+00> : vector<32x512xf32>
    %7 = tpu.matmul %0, %6#0, %cst_8 {dimension_numbers = #tpu.dot_dimension_numbers<[1], [0], [0], [1], [0, 0, 1, 1], [], []>} : vector<32x32xf32>, vector<32x512xf32>, vector<32x512xf32> -> vector<32x512xf32>
    %8 = arith.addf %7, %4 : vector<32x512xf32>
    %9 = math.tanh %8 : vector<32x512xf32>
    %c0_9 = arith.constant 0 : index
    %c0_10 = arith.constant 0 : index
    %10 = vector.load %arg4[%c0_9, %c0_10] : memref<32x512xf32, #tpu.memory_space<vmem>>, vector<32x512xf32>
    tpu.vector_store %arg4[%c0_9, %c0_10], %9 {strides = array<i32>} : memref<32x512xf32, #tpu.memory_space<vmem>>, vector<32x512xf32>,
    %c0_11 = arith.constant 0 : index
    %c0_12 = arith.constant 0 : index
    %11 = memref.load %arg5[%c0_11, %c0_12] : memref<1x2xf32, #tpu.memory_space<smem>>
    memref.store %6#1, %arg5[%c0_11, %c0_12] : memref<1x2xf32, #tpu.memory_space<smem>>
    %c0_13 = arith.constant 0 : index
    %c1 = arith.constant 1 : index
    %12 = memref.load %arg5[%c0_13, %c1] : memref<1x2xf32, #tpu.memory_space<smem>>
    memref.store %6#2, %arg5[%c0_13, %c1] : memref<1x2xf32, #tpu.memory_space<smem>>
    return
  }
  func.func @transform_0(%arg0: i32) -> (i32, i32) {
    %c0_i32 = arith.constant 0 : i32
    %c0_i32_0 = arith.constant 0 : i32
    return %c0_i32, %arg0 : i32, i32
  }
  func.func @transform_1(%arg0: i32) -> (i32, i32) {
    %c0_i32 = arith.constant 0 : i32
    %c0_i32_0 = arith.constant 0 : i32
    %c0_i32_1 = arith.constant 0 : i32
    return %c0_i32, %c0_i32_0 : i32, i32
  }
  func.func @transform_2(%arg0: i32) -> (i32, i32) {
    %c0_i32 = arith.constant 0 : i32
    %c0_i32_0 = arith.constant 0 : i32
    %c0_i32_1 = arith.constant 0 : i32
    return %c0_i32, %c0_i32_0 : i32, i32
  }
  func.func @transform_3(%arg0: i32) -> (i32, i32) {
    %c0_i32 = arith.constant 0 : i32
    %c0_i32_0 = arith.constant 0 : i32
    return %c0_i32, %arg0 : i32, i32
  }
  func.func @transform_4(%arg0: i32) -> (i32, i32) {
    %c0_i32 = arith.constant 0 : i32
    %c0_i32_0 = arith.constant 0 : i32
    return %arg0, %c0_i32 : i32, i32
  }
}

</mosaic_0001>

<llo_original>
// kernel: tpu_custom_call.1
$region0: #{tpu_custom_call.1}
  #allocation0 [shape = 'u32[]', space=smem, size = 0x4, offset = 0x4, fixed_abs, tag = 'smem constant byte address 0x4 - core index']
  #allocation1 [shape = 'u32[144,128]{1,0:T(1,128)}', space=vmem, size = 0x12000, scoped, tag = 'internal scratch']
  %s0 = inlined_call_operand.hbm [shape: f32[32,512], index: 0, kind: input, shape index: {}]
  %s1 = inlined_call_operand.vmem [shape: f32[32,32], index: 1, kind: input, shape index: {}]
  %s2 = inlined_call_operand.vmem [shape: f32[32,1], index: 2, kind: input, shape index: {}]
  %s3 = inlined_call_operand.hbm [shape: f32[32,512], index: 3, kind: output, shape index: {0}]
  %s4 = inlined_call_operand.hbm [shape: f32[1,2], index: 4, kind: output, shape index: {1}]
  %5 = xla_tuple %s3, %s4
  %s6 = sld [smem:[#allocation0]]
  $region41: #{tpu_custom_call.1} parent=0
    _
  %s8 = ssub.s32 1, %s6
  %s9 = scalar_select 0, %s8, %s6
  $region1: #{tpu_custom_call.1} parent=0
    #allocation2 [shape = 'u8[65536]{0}', space=vmem, size = 0x10000, scoped, tag = 'input window, operand 0, single buffered']
    #allocation3 [shape = 's32[1]{0}', space=sflag, size = 0x4, scoped, tag = 'scoped memory for tpu_custom_call.1']
    #allocation4 [shape = 's32[1]{0}', space=sflag, size = 0x4, scoped, tag = 'scoped memory for tpu_custom_call.1']
    #allocation5 [shape = 's32[1]{0}', space=sflag, size = 0x4, scoped, tag = 'scoped memory for tpu_custom_call.1']
    #allocation6 [shape = 'u8[65536]{0}', space=vmem, size = 0x10000, scoped, tag = 'output window, operand 0, single buffered']
    #allocation7 [shape = 'u8[512]{0}', space=smem, size = 0x200, scoped, tag = 'output window, operand 1, single buffered']
    %10 = vsyncpa [#allocation3], 0
    %11 = vsyncpa [#allocation4], 0
    %12 = vsyncpa [#allocation5], 0
    // Predicated region
    $region2: #{tpu_custom_call.1} parent=1 // pred_check
      _
    $region3: #{tpu_custom_call.1} parent=1 // pred_check_branch
      %14 = sbr.rel (0) target = $region5
    $region4: #{tpu_custom_call.1} parent=1 // pred_region
      %s16 = ssub.s32 2048, 2048
      %17 = vsyncadd [#allocation3], %s16
      %s18 = sshll.u32 [#allocation2], 4
      %s19 = int_to_ptr.vmem [resolvable:$true] %s18
      %24 = dma.hbm_to_vmem [thread:$0]  %s0, 2048, %s19, [#allocation3], 512, 512, 32
    $region5: #{tpu_custom_call.1} parent=1 // pred_fallthru
      _
    // Predicated region
    $region6: #{tpu_custom_call.1} parent=1 // pred_check
      _
    $region7: #{tpu_custom_call.1} parent=1 // pred_check_branch
      %26 = sbr.rel (0) target = $region9
    $region8: #{tpu_custom_call.1} parent=1 // pred_region
      _
    $region9: #{tpu_custom_call.1} parent=1 // pred_fallthru
      _
    // Predicated region
    $region10: #{tpu_custom_call.1} parent=1 // pred_check
      _
    $region11: #{tpu_custom_call.1} parent=1 // pred_check_branch
      %28 = sbr.rel (0) target = $region13
    $region12: #{tpu_custom_call.1} parent=1 // pred_region
      _
    $region13: #{tpu_custom_call.1} parent=1 // pred_fallthru
      _
    // Predicated region
    $region14: #{tpu_custom_call.1} parent=1 // pred_check
      _
    $region15: #{tpu_custom_call.1} parent=1 // pred_check_branch
      %30 = sbr.rel (0) target = $region17
    $region16: #{tpu_custom_call.1} parent=1 // pred_region
      %31 = dma.done [#allocation3], 2048
    $region17: #{tpu_custom_call.1} parent=1 // pred_fallthru
      _
    %v32 = vld [vmem:[%s1] sm:$0xff]
    %v33 = vld [vmem:[%s1 + $0x8] sm:$0xff]
    %v34 = vld [vmem:[%s1 + $0x10] sm:$0xff]
    %v35 = vld [vmem:[%s1 + $0x18] sm:$0xff]
    %v36 = vld [vmem:[#allocation2] sm:$0xff]
    %v37 = vld [vmem:[#allocation2 + $0x8] sm:$0xff]
    %v38 = vld [vmem:[#allocation2 + $0x10] sm:$0xff]
    %v39 = vld [vmem:[#allocation2 + $0x18] sm:$0xff]
    %v40 = vld [vmem:[#allocation2 + $0x20] sm:$0xff]
    %v41 = vld [vmem:[#allocation2 + $0x28] sm:$0xff]
    %v42 = vld [vmem:[#allocation2 + $0x30] sm:$0xff]
    %v43 = vld [vmem:[#allocation2 + $0x38] sm:$0xff]
    %v44 = vld [vmem:[#allocation2 + $0x40] sm:$0xff]
    %v45 = vld [vmem:[#allocation2 + $0x48] sm:$0xff]
    %v46 = vld [vmem:[#allocation2 + $0x50] sm:$0xff]
    %v47 = vld [vmem:[#allocation2 + $0x58] sm:$0xff]
    %v48 = vld [vmem:[#allocation2 + $0x60] sm:$0xff]
    %v49 = vld [vmem:[#allocation2 + $0x68] sm:$0xff]
    %v50 = vld [vmem:[#allocation2 + $0x70] sm:$0xff]
    %v51 = vld [vmem:[#allocation2 + $0x78] sm:$0xff]
    %v52 = vld [vmem:[%s2] sm:$0xff]
    %v53 = vld [vmem:[%s2 + $0x8] sm:$0xff]
    %v54 = vld [vmem:[%s2 + $0x10] sm:$0xff]
    %v55 = vld [vmem:[%s2 + $0x18] sm:$0xff]
    %57 = vset.pattern.permute.xlu0 0
    %58 = vperm.xlu0 %57, %v52
    %v59 = vpop.permute.xlu0 %58
    %62 = vset.pattern.permute.xlu0 0
    %63 = vperm.xlu0 %62, %v53
    %v64 = vpop.permute.xlu0 %63
    %67 = vset.pattern.permute.xlu0 0
    %68 = vperm.xlu0 %67, %v54
    %v69 = vpop.permute.xlu0 %68
    %72 = vset.pattern.permute.xlu0 0
    %73 = vperm.xlu0 %72, %v55
    %v74 = vpop.permute.xlu0 %73
    %v76 = vadd.f32 %v36, %v59
    %v77 = vadd.f32 %v37, %v59
    %v78 = vadd.f32 %v38, %v59
    %v79 = vadd.f32 %v39, %v59
    %v80 = vadd.f32 %v40, %v64
    %v81 = vadd.f32 %v41, %v64
    %v82 = vadd.f32 %v42, %v64
    %v83 = vadd.f32 %v43, %v64
    %v84 = vadd.f32 %v44, %v69
    %v85 = vadd.f32 %v45, %v69
    %v86 = vadd.f32 %v46, %v69
    %v87 = vadd.f32 %v47, %v69
    %v88 = vadd.f32 %v48, %v74
    %v89 = vadd.f32 %v49, %v74
    %v90 = vadd.f32 %v50, %v74
    %v91 = vadd.f32 %v51, %v74
    %v92 = vtanh.pop %v76
    %v93 = vtanh.pop %v77
    %v94 = vtanh.pop %v78
    %v95 = vtanh.pop %v79
    %v96 = vtanh.pop %v80
    %v97 = vtanh.pop %v81
    %v98 = vtanh.pop %v82
    %v99 = vtanh.pop %v83
    %v100 = vtanh.pop %v84
    %v101 = vtanh.pop %v85
    %v102 = vtanh.pop %v86
    %v103 = vtanh.pop %v87
    %v104 = vtanh.pop %v88
    %v105 = vtanh.pop %v89
    %v106 = vtanh.pop %v90
    %v107 = vtanh.pop %v91
    // While loop
    $region18: #{tpu_custom_call.1} parent=1 // loop_pre_header
      _
    $region19: #{tpu_custom_call.1} parent=1 // loop_header
      %v109 = vphi %v92, %v715
      %v110 = vphi %v93, %v716
      %v111 = vphi %v94, %v717
      %v112 = vphi %v95, %v718
      %v113 = vphi %v96, %v719
      %v114 = vphi %v97, %v720
      %v115 = vphi %v98, %v721
      %v116 = vphi %v99, %v722
      %v117 = vphi %v100, %v723
      %v118 = vphi %v101, %v724
      %v119 = vphi %v102, %v725
      %v120 = vphi %v103, %v726
      %v121 = vphi %v104, %v727
      %v122 = vphi %v105, %v728
      %v123 = vphi %v106, %v729
      %v124 = vphi %v107, %v730
      %s125 = sphi inf, %s786
      %s126 = sphi 0.0, %s826
      %s127 = sphi 0, %s827
      %p128 = scmp.lt.s32.totalorder %s127, 30
      %s129 = sadd.f32 %s126, 1e-10
      %s130 = smul.f32 %s129, 1e-08
      %p131 = scmp.ge.f32.partialorder %s125, %s130
      %p132 = pnand %p128, %p131
      %p133 = pneg %p132
    $region20: #{tpu_custom_call.1} parent=1 // loop_header_branch
      %135 = sbr.rel (%p132) target = $region24
    $region21: #{tpu_custom_call.1} parent=1 // loop_body
      %vm136 = vcmask 261120
      %v138 = vsel %vm136, %v32, 0
      %v141 = vsel %vm136, %v33, 0
      %v144 = vsel %vm136, %v34, 0
      %v147 = vsel %vm136, %v35, 0
      %149 = vmatprep.subr.mxu0 %v110
      %150 = vmatpush1.msra.mxu0 %v109
      %151 = vmatprep.subr.mxu0 %v114
      %152 = vmatpush1.msra.mxu0 %v113
      %153 = vmatprep.subr.mxu0 %v118
      %154 = vmatpush1.msra.mxu0 %v117
      %155 = vmatprep.subr.mxu0 %v122
      %156 = vmatpush1.msra.mxu0 %v121
      %157 = vmatprep.subr.mxu0 0.0
      %158 = vmatpush1.msra.mxu0 0.0
      %159 = vmatprep.subr.mxu0 0.0
      %160 = vmatpush1.msra.mxu0 0.0
      %161 = vmatprep.subr.mxu0 0.0
      %162 = vmatpush1.msra.mxu0 0.0
      %163 = vmatprep.subr.mxu0 0.0
      %164 = vmatpush1.msra.mxu0 0.0
      %165 = vmatprep.subr.mxu0 0.0
      %166 = vmatpush1.msra.mxu0 0.0
      %167 = vmatprep.subr.mxu0 0.0
      %168 = vmatpush1.msra.mxu0 0.0
      %169 = vmatprep.subr.mxu0 0.0
      %170 = vmatpush1.msra.mxu0 0.0
      %171 = vmatprep.subr.mxu0 0.0
      %172 = vmatpush1.msra.mxu0 0.0
      %173 = vmatprep.subr.mxu0 0.0
      %174 = vmatpush1.msra.mxu0 0.0
      %175 = vmatprep.subr.mxu0 0.0
      %176 = vmatpush1.msra.mxu0 0.0
      %177 = vmatprep.subr.mxu0 0.0
      %178 = vmatpush1.msra.mxu0 0.0
      %179 = vmatprep.subr.mxu0 0.0
      %180 = vmatpush1.msra.mxu0 0.0
      %181 = vmatprep.subr.mxu0 0.0
      %182 = vmatpush1.msra.mxu0 0.0
      %183 = vmatprep.subr.mxu0 0.0
      %184 = vmatpush1.msra.mxu0 0.0
      %185 = vmatprep.subr.mxu0 0.0
      %186 = vmatpush1.msra.mxu0 0.0
      %187 = vmatprep.subr.mxu0 0.0
      %188 = vmatpush1.msra.mxu0 0.0
      %189 = vmatprep.subr.mxu0 0.0
      %190 = vmatpush1.msra.mxu0 0.0
      %191 = vmatprep.subr.mxu0 0.0
      %192 = vmatpush1.msra.mxu0 0.0
      %193 = vmatprep.subr.mxu0 0.0
      %194 = vmatpush1.msra.mxu0 0.0
      %195 = vmatprep.subr.mxu0 0.0
      %196 = vmatpush1.msra.mxu0 0.0
      %197 = vmatprep.subr.mxu0 0.0
      %198 = vmatpush1.msra.mxu0 0.0
      %199 = vmatprep.subr.mxu0 0.0
      %200 = vmatpush1.msra.mxu0 0.0
      %201 = vmatprep.subr.mxu0 0.0
      %202 = vmatpush1.msra.mxu0 0.0
      %203 = vmatprep.subr.mxu0 0.0
      %204 = vmatpush1.msra.mxu0 0.0
      %205 = vmatprep.subr.mxu0 0.0
      %206 = vmatpush1.msra.mxu0 0.0
      %207 = vmatprep.subr.mxu0 0.0
      %208 = vmatpush1.msra.mxu0 0.0
      %209 = vmatprep.subr.mxu0 0.0
      %210 = vmatpush1.msra.mxu0 0.0
      %211 = vmatprep.subr.mxu0 0.0
      %212 = vmatpush1.msra.mxu0 0.0
      %213 = vmatprep.mubr.f32.mxu0 0.0
      %214 = vmatmul.mubr.f32.gmra.mrb[0].mxu0 %v138
      %v215 = vpop.f32.mrb[0].mxu0
      %v216 = vadd.f32 %v76, %v215
      %v217 = vpop.f32.mrb[0].mxu0
      %v218 = vadd.f32 %v77, %v217
      %219 = vmatprep.mubr.f32.mxu0 0.0
      %220 = vmatmul.mubr.f32.gmra.mrb[0].mxu0 %v141
      %v221 = vpop.f32.mrb[0].mxu0
      %v222 = vadd.f32 %v80, %v221
      %v223 = vpop.f32.mrb[0].mxu0
      %v224 = vadd.f32 %v81, %v223
      %225 = vmatprep.mubr.f32.mxu0 0.0
      %226 = vmatmul.mubr.f32.gmra.mrb[0].mxu0 %v144
      %v227 = vpop.f32.mrb[0].mxu0
      %v228 = vadd.f32 %v84, %v227
      %v229 = vpop.f32.mrb[0].mxu0
      %v230 = vadd.f32 %v85, %v229
      %231 = vmatprep.mubr.f32.mxu0 0.0
      %232 = vmatmul.mubr.f32.gmra.mrb[0].mxu0 %v147
      %v233 = vpop.f32.mrb[0].mxu0
      %v234 = vadd.f32 %v88, %v233
      %v235 = vpop.f32.mrb[0].mxu0
      %v236 = vadd.f32 %v89, %v235
      %237 = vdwg.mxu0
      %238 = vmatprep.subr.mxu0 %v112
      %239 = vmatpush1.msra.mxu0 %v111
      %240 = vmatprep.subr.mxu0 %v116
      %241 = vmatpush1.msra.mxu0 %v115
      %242 = vmatprep.subr.mxu0 %v120
      %243 = vmatpush1.msra.mxu0 %v119
      %244 = vmatprep.subr.mxu0 %v124
      %245 = vmatpush1.msra.mxu0 %v123
      %246 = vmatprep.subr.mxu0 0.0
      %247 = vmatpush1.msra.mxu0 0.0
      %248 = vmatprep.subr.mxu0 0.0
      %249 = vmatpush1.msra.mxu0 0.0
      %250 = vmatprep.subr.mxu0 0.0
      %251 = vmatpush1.msra.mxu0 0.0
      %252 = vmatprep.subr.mxu0 0.0
      %253 = vmatpush1.msra.mxu0 0.0
      %254 = vmatprep.subr.mxu0 0.0
      %255 = vmatpush1.msra.mxu0 0.0
      %256 = vmatprep.subr.mxu0 0.0
      %257 = vmatpush1.msra.mxu0 0.0
      %258 = vmatprep.subr.mxu0 0.0
      %259 = vmatpush1.msra.mxu0 0.0
      %260 = vmatprep.subr.mxu0 0.0
      %261 = vmatpush1.msra.mxu0 0.0
      %262 = vmatprep.subr.mxu0 0.0
      %263 = vmatpush1.msra.mxu0 0.0
      %264 = vmatprep.subr.mxu0 0.0
      %265 = vmatpush1.msra.mxu0 0.0
      %266 = vmatprep.subr.mxu0 0.0
      %267 = vmatpush1.msra.mxu0 0.0
      %268 = vmatprep.subr.mxu0 0.0
      %269 = vmatpush1.msra.mxu0 0.0
      %270 = vmatprep.subr.mxu0 0.0
      %271 = vmatpush1.msra.mxu0 0.0
      %272 = vmatprep.subr.mxu0 0.0
      %273 = vmatpush1.msra.mxu0 0.0
      %274 = vmatprep.subr.mxu0 0.0
      %275 = vmatpush1.msra.mxu0 0.0
      %276 = vmatprep.subr.mxu0 0.0
      %277 = vmatpush1.msra.mxu0 0.0
      %278 = vmatprep.subr.mxu0 0.0
      %279 = vmatpush1.msra.mxu0 0.0
      %280 = vmatprep.subr.mxu0 0.0
      %281 = vmatpush1.msra.mxu0 0.0
      %282 = vmatprep.subr.mxu0 0.0
      %283 = vmatpush1.msra.mxu0 0.0
      %284 = vmatprep.subr.mxu0 0.0
      %285 = vmatpush1.msra.mxu0 0.0
      %286 = vmatprep.subr.mxu0 0.0
      %287 = vmatpush1.msra.mxu0 0.0
      %288 = vmatprep.subr.mxu0 0.0
      %289 = vmatpush1.msra.mxu0 0.0
      %290 = vmatprep.subr.mxu0 0.0
      %291 = vmatpush1.msra.mxu0 0.0
      %292 = vmatprep.subr.mxu0 0.0
      %293 = vmatpush1.msra.mxu0 0.0
      %294 = vmatprep.subr.mxu0 0.0
      %295 = vmatpush1.msra.mxu0 0.0
      %296 = vmatprep.subr.mxu0 0.0
      %297 = vmatpush1.msra.mxu0 0.0
      %298 = vmatprep.subr.mxu0 0.0
      %299 = vmatpush1.msra.mxu0 0.0
      %300 = vmatprep.subr.mxu0 0.0
      %301 = vmatpush1.msra.mxu0 0.0
      %302 = vmatprep.mubr.f32.mxu0 0.0
      %303 = vmatmul.mubr.f32.gmra.mrb[0].mxu0 %v138
      %v304 = vpop.f32.mrb[0].mxu0
      %v305 = vadd.f32 %v78, %v304
      %v306 = vpop.f32.mrb[0].mxu0
      %v307 = vadd.f32 %v79, %v306
      %308 = vmatprep.mubr.f32.mxu0 0.0
      %309 = vmatmul.mubr.f32.gmra.mrb[0].mxu0 %v141
      %v310 = vpop.f32.mrb[0].mxu0
      %v311 = vadd.f32 %v82, %v310
      %v312 = vpop.f32.mrb[0].mxu0
      %v313 = vadd.f32 %v83, %v312
      %314 = vmatprep.mubr.f32.mxu0 0.0
      %315 = vmatmul.mubr.f32.gmra.mrb[0].mxu0 %v144
      %v316 = vpop.f32.mrb[0].mxu0
      %v317 = vadd.f32 %v86, %v316
      %v318 = vpop.f32.mrb[0].mxu0
      %v319 = vadd.f32 %v87, %v318
      %320 = vmatprep.mubr.f32.mxu0 0.0
      %321 = vmatmul.mubr.f32.gmra.mrb[0].mxu0 %v147
      %v322 = vpop.f32.mrb[0].mxu0
      %v323 = vadd.f32 %v90, %v322
      %v324 = vpop.f32.mrb[0].mxu0
      %v325 = vadd.f32 %v91, %v324
      %326 = vdwg.mxu0
      %v327 = vtanh.pop %v216
      %v328 = vtanh.pop %v218
      %v329 = vtanh.pop %v305
      %v330 = vtanh.pop %v307
      %v331 = vtanh.pop %v222
      %v332 = vtanh.pop %v224
      %v333 = vtanh.pop %v311
      %v334 = vtanh.pop %v313
      %v335 = vtanh.pop %v228
      %v336 = vtanh.pop %v230
      %v337 = vtanh.pop %v317
      %v338 = vtanh.pop %v319
      %v339 = vtanh.pop %v234
      %v340 = vtanh.pop %v236
      %v341 = vtanh.pop %v323
      %v342 = vtanh.pop %v325
      %343 = vmatprep.subr.mxu0 %v328
      %344 = vmatpush1.msra.mxu0 %v327
      %345 = vmatprep.subr.mxu0 %v332
      %346 = vmatpush1.msra.mxu0 %v331
      %347 = vmatprep.subr.mxu0 %v336
      %348 = vmatpush1.msra.mxu0 %v335
      %349 = vmatprep.subr.mxu0 %v340
      %350 = vmatpush1.msra.mxu0 %v339
      %351 = vmatprep.subr.mxu0 0.0
      %352 = vmatpush1.msra.mxu0 0.0
      %353 = vmatprep.subr.mxu0 0.0
      %354 = vmatpush1.msra.mxu0 0.0
      %355 = vmatprep.subr.mxu0 0.0
      %356 = vmatpush1.msra.mxu0 0.0
      %357 = vmatprep.subr.mxu0 0.0
      %358 = vmatpush1.msra.mxu0 0.0
      %359 = vmatprep.subr.mxu0 0.0
      %360 = vmatpush1.msra.mxu0 0.0
      %361 = vmatprep.subr.mxu0 0.0
      %362 = vmatpush1.msra.mxu0 0.0
      %363 = vmatprep.subr.mxu0 0.0
      %364 = vmatpush1.msra.mxu0 0.0
      %365 = vmatprep.subr.mxu0 0.0
      %366 = vmatpush1.msra.mxu0 0.0
      %367 = vmatprep.subr.mxu0 0.0
      %368 = vmatpush1.msra.mxu0 0.0
      %369 = vmatprep.subr.mxu0 0.0
      %370 = vmatpush1.msra.mxu0 0.0
      %371 = vmatprep.subr.mxu0 0.0
      %372 = vmatpush1.msra.mxu0 0.0
      %373 = vmatprep.subr.mxu0 0.0
      %374 = vmatpush1.msra.mxu0 0.0
      %375 = vmatprep.subr.mxu0 0.0
      %376 = vmatpush1.msra.mxu0 0.0
      %377 = vmatprep.subr.mxu0 0.0
      %378 = vmatpush1.msra.mxu0 0.0
      %379 = vmatprep.subr.mxu0 0.0
      %380 = vmatpush1.msra.mxu0 0.0
      %381 = vmatprep.subr.mxu0 0.0
      %382 = vmatpush1.msra.mxu0 0.0
      %383 = vmatprep.subr.mxu0 0.0
      %384 = vmatpush1.msra.mxu0 0.0
      %385 = vmatprep.subr.mxu0 0.0
      %386 = vmatpush1.msra.mxu0 0.0
      %387 = vmatprep.subr.mxu0 0.0
      %388 = vmatpush1.msra.mxu0 0.0
      %389 = vmatprep.subr.mxu0 0.0
      %390 = vmatpush1.msra.mxu0 0.0
      %391 = vmatprep.subr.mxu0 0.0
      %392 = vmatpush1.msra.mxu0 0.0
      %393 = vmatprep.subr.mxu0 0.0
      %394 = vmatpush1.msra.mxu0 0.0
      %395 = vmatprep.subr.mxu0 0.0
      %396 = vmatpush1.msra.mxu0 0.0
      %397 = vmatprep.subr.mxu0 0.0
      %398 = vmatpush1.msra.mxu0 0.0
      %399 = vmatprep.subr.mxu0 0.0
      %400 = vmatpush1.msra.mxu0 0.0
      %401 = vmatprep.subr.mxu0 0.0
      %402 = vmatpush1.msra.mxu0 0.0
      %403 = vmatprep.subr.mxu0 0.0
      %404 = vmatpush1.msra.mxu0 0.0
      %405 = vmatprep.subr.mxu0 0.0
      %406 = vmatpush1.msra.mxu0 0.0
      %407 = vmatprep.mubr.f32.mxu0 0.0
      %408 = vmatmul.mubr.f32.gmra.mrb[0].mxu0 %v138
      %v409 = vpop.f32.mrb[0].mxu0
      %v410 = vadd.f32 %v76, %v409
      %v411 = vpop.f32.mrb[0].mxu0
      %v412 = vadd.f32 %v77, %v411
      %413 = vmatprep.mubr.f32.mxu0 0.0
      %414 = vmatmul.mubr.f32.gmra.mrb[0].mxu0 %v141
      %v415 = vpop.f32.mrb[0].mxu0
      %v416 = vadd.f32 %v80, %v415
      %v417 = vpop.f32.mrb[0].mxu0
      %v418 = vadd.f32 %v81, %v417
      %419 = vmatprep.mubr.f32.mxu0 0.0
      %420 = vmatmul.mubr.f32.gmra.mrb[0].mxu0 %v144
      %v421 = vpop.f32.mrb[0].mxu0
      %v422 = vadd.f32 %v84, %v421
      %v423 = vpop.f32.mrb[0].mxu0
      %v424 = vadd.f32 %v85, %v423
      %425 = vmatprep.mubr.f32.mxu0 0.0
      %426 = vmatmul.mubr.f32.gmra.mrb[0].mxu0 %v147
      %v427 = vpop.f32.mrb[0].mxu0
      %v428 = vadd.f32 %v88, %v427
      %v429 = vpop.f32.mrb[0].mxu0
      %v430 = vadd.f32 %v89, %v429
      %431 = vdwg.mxu0
      %432 = vmatprep.subr.mxu0 %v330
      %433 = vmatpush1.msra.mxu0 %v329
      %434 = vmatprep.subr.mxu0 %v334
      %435 = vmatpush1.msra.mxu0 %v333
      %436 = vmatprep.subr.mxu0 %v338
      %437 = vmatpush1.msra.mxu0 %v337
      %438 = vmatprep.subr.mxu0 %v342
      %439 = vmatpush1.msra.mxu0 %v341
      %440 = vmatprep.subr.mxu0 0.0
      %441 = vmatpush1.msra.mxu0 0.0
      %442 = vmatprep.subr.mxu0 0.0
      %443 = vmatpush1.msra.mxu0 0.0
      %444 = vmatprep.subr.mxu0 0.0
      %445 = vmatpush1.msra.mxu0 0.0
      %446 = vmatprep.subr.mxu0 0.0
      %447 = vmatpush1.msra.mxu0 0.0
      %448 = vmatprep.subr.mxu0 0.0
      %449 = vmatpush1.msra.mxu0 0.0
      %450 = vmatprep.subr.mxu0 0.0
      %451 = vmatpush1.msra.mxu0 0.0
      %452 = vmatprep.subr.mxu0 0.0
      %453 = vmatpush1.msra.mxu0 0.0
      %454 = vmatprep.subr.mxu0 0.0
      %455 = vmatpush1.msra.mxu0 0.0
      %456 = vmatprep.subr.mxu0 0.0
      %457 = vmatpush1.msra.mxu0 0.0
      %458 = vmatprep.subr.mxu0 0.0
      %459 = vmatpush1.msra.mxu0 0.0
      %460 = vmatprep.subr.mxu0 0.0
      %461 = vmatpush1.msra.mxu0 0.0
      %462 = vmatprep.subr.mxu0 0.0
      %463 = vmatpush1.msra.mxu0 0.0
      %464 = vmatprep.subr.mxu0 0.0
      %465 = vmatpush1.msra.mxu0 0.0
      %466 = vmatprep.subr.mxu0 0.0
      %467 = vmatpush1.msra.mxu0 0.0
      %468 = vmatprep.subr.mxu0 0.0
      %469 = vmatpush1.msra.mxu0 0.0
      %470 = vmatprep.subr.mxu0 0.0
      %471 = vmatpush1.msra.mxu0 0.0
      %472 = vmatprep.subr.mxu0 0.0
      %473 = vmatpush1.msra.mxu0 0.0
      %474 = vmatprep.subr.mxu0 0.0
      %475 = vmatpush1.msra.mxu0 0.0
      %476 = vmatprep.subr.mxu0 0.0
      %477 = vmatpush1.msra.mxu0 0.0
      %478 = vmatprep.subr.mxu0 0.0
      %479 = vmatpush1.msra.mxu0 0.0
      %480 = vmatprep.subr.mxu0 0.0
      %481 = vmatpush1.msra.mxu0 0.0
      %482 = vmatprep.subr.mxu0 0.0
      %483 = vmatpush1.msra.mxu0 0.0
      %484 = vmatprep.subr.mxu0 0.0
      %485 = vmatpush1.msra.mxu0 0.0
      %486 = vmatprep.subr.mxu0 0.0
      %487 = vmatpush1.msra.mxu0 0.0
      %488 = vmatprep.subr.mxu0 0.0
      %489 = vmatpush1.msra.mxu0 0.0
      %490 = vmatprep.subr.mxu0 0.0
      %491 = vmatpush1.msra.mxu0 0.0
      %492 = vmatprep.subr.mxu0 0.0
      %493 = vmatpush1.msra.mxu0 0.0
      %494 = vmatprep.subr.mxu0 0.0
      %495 = vmatpush1.msra.mxu0 0.0
      %496 = vmatprep.mubr.f32.mxu0 0.0
      %497 = vmatmul.mubr.f32.gmra.mrb[0].mxu0 %v138
      %v498 = vpop.f32.mrb[0].mxu0
      %v499 = vadd.f32 %v78, %v498
      %v500 = vpop.f32.mrb[0].mxu0
      %v501 = vadd.f32 %v79, %v500
      %502 = vmatprep.mubr.f32.mxu0 0.0
      %503 = vmatmul.mubr.f32.gmra.mrb[0].mxu0 %v141
      %v504 = vpop.f32.mrb[0].mxu0
      %v505 = vadd.f32 %v82, %v504
      %v506 = vpop.f32.mrb[0].mxu0
      %v507 = vadd.f32 %v83, %v506
      %508 = vmatprep.mubr.f32.mxu0 0.0
      %509 = vmatmul.mubr.f32.gmra.mrb[0].mxu0 %v144
      %v510 = vpop.f32.mrb[0].mxu0
      %v511 = vadd.f32 %v86, %v510
      %v512 = vpop.f32.mrb[0].mxu0
      %v513 = vadd.f32 %v87, %v512
      %514 = vmatprep.mubr.f32.mxu0 0.0
      %515 = vmatmul.mubr.f32.gmra.mrb[0].mxu0 %v147
      %v516 = vpop.f32.mrb[0].mxu0
      %v517 = vadd.f32 %v90, %v516
      %v518 = vpop.f32.mrb[0].mxu0
      %v519 = vadd.f32 %v91, %v518
      %520 = vdwg.mxu0
      %v521 = vtanh.pop %v410
      %v522 = vtanh.pop %v412
      %v523 = vtanh.pop %v499
      %v524 = vtanh.pop %v501
      %v525 = vtanh.pop %v416
      %v526 = vtanh.pop %v418
      %v527 = vtanh.pop %v505
      %v528 = vtanh.pop %v507
      %v529 = vtanh.pop %v422
      %v530 = vtanh.pop %v424
      %v531 = vtanh.pop %v511
      %v532 = vtanh.pop %v513
      %v533 = vtanh.pop %v428
      %v534 = vtanh.pop %v430
      %v535 = vtanh.pop %v517
      %v536 = vtanh.pop %v519
      %537 = vmatprep.subr.mxu0 %v522
      %538 = vmatpush1.msra.mxu0 %v521
      %539 = vmatprep.subr.mxu0 %v526
      %540 = vmatpush1.msra.mxu0 %v525
      %541 = vmatprep.subr.mxu0 %v530
      %542 = vmatpush1.msra.mxu0 %v529
      %543 = vmatprep.subr.mxu0 %v534
      %544 = vmatpush1.msra.mxu0 %v533
      %545 = vmatprep.subr.mxu0 0.0
      %546 = vmatpush1.msra.mxu0 0.0
      %547 = vmatprep.subr.mxu0 0.0
      %548 = vmatpush1.msra.mxu0 0.0
      %549 = vmatprep.subr.mxu0 0.0
      %550 = vmatpush1.msra.mxu0 0.0
      %551 = vmatprep.subr.mxu0 0.0
      %552 = vmatpush1.msra.mxu0 0.0
      %553 = vmatprep.subr.mxu0 0.0
      %554 = vmatpush1.msra.mxu0 0.0
      %555 = vmatprep.subr.mxu0 0.0
      %556 = vmatpush1.msra.mxu0 0.0
      %557 = vmatprep.subr.mxu0 0.0
      %558 = vmatpush1.msra.mxu0 0.0
      %559 = vmatprep.subr.mxu0 0.0
      %560 = vmatpush1.msra.mxu0 0.0
      %561 = vmatprep.subr.mxu0 0.0
      %562 = vmatpush1.msra.mxu0 0.0
      %563 = vmatprep.subr.mxu0 0.0
      %564 = vmatpush1.msra.mxu0 0.0
      %565 = vmatprep.subr.mxu0 0.0
      %566 = vmatpush1.msra.mxu0 0.0
      %567 = vmatprep.subr.mxu0 0.0
      %568 = vmatpush1.msra.mxu0 0.0
      %569 = vmatprep.subr.mxu0 0.0
      %570 = vmatpush1.msra.mxu0 0.0
      %571 = vmatprep.subr.mxu0 0.0
      %572 = vmatpush1.msra.mxu0 0.0
      %573 = vmatprep.subr.mxu0 0.0
      %574 = vmatpush1.msra.mxu0 0.0
      %575 = vmatprep.subr.mxu0 0.0
      %576 = vmatpush1.msra.mxu0 0.0
      %577 = vmatprep.subr.mxu0 0.0
      %578 = vmatpush1.msra.mxu0 0.0
      %579 = vmatprep.subr.mxu0 0.0
      %580 = vmatpush1.msra.mxu0 0.0
      %581 = vmatprep.subr.mxu0 0.0
      %582 = vmatpush1.msra.mxu0 0.0
      %583 = vmatprep.subr.mxu0 0.0
      %584 = vmatpush1.msra.mxu0 0.0
      %585 = vmatprep.subr.mxu0 0.0
      %586 = vmatpush1.msra.mxu0 0.0
      %587 = vmatprep.subr.mxu0 0.0
      %588 = vmatpush1.msra.mxu0 0.0
      %589 = vmatprep.subr.mxu0 0.0
      %590 = vmatpush1.msra.mxu0 0.0
      %591 = vmatprep.subr.mxu0 0.0
      %592 = vmatpush1.msra.mxu0 0.0
      %593 = vmatprep.subr.mxu0 0.0
      %594 = vmatpush1.msra.mxu0 0.0
      %595 = vmatprep.subr.mxu0 0.0
      %596 = vmatpush1.msra.mxu0 0.0
      %597 = vmatprep.subr.mxu0 0.0
      %598 = vmatpush1.msra.mxu0 0.0
      %599 = vmatprep.subr.mxu0 0.0
      %600 = vmatpush1.msra.mxu0 0.0
      %601 = vmatprep.mubr.f32.mxu0 0.0
      %602 = vmatmul.mubr.f32.gmra.mrb[0].mxu0 %v138
      %v603 = vpop.f32.mrb[0].mxu0
      %v604 = vadd.f32 %v76, %v603
      %v605 = vpop.f32.mrb[0].mxu0
      %v606 = vadd.f32 %v77, %v605
      %607 = vmatprep.mubr.f32.mxu0 0.0
      %608 = vmatmul.mubr.f32.gmra.mrb[0].mxu0 %v141
      %v609 = vpop.f32.mrb[0].mxu0
      %v610 = vadd.f32 %v80, %v609
      %v611 = vpop.f32.mrb[0].mxu0
      %v612 = vadd.f32 %v81, %v611
      %613 = vmatprep.mubr.f32.mxu0 0.0
      %614 = vmatmul.mubr.f32.gmra.mrb[0].mxu0 %v144
      %v615 = vpop.f32.mrb[0].mxu0
      %v616 = vadd.f32 %v84, %v615
      %v617 = vpop.f32.mrb[0].mxu0
      %v618 = vadd.f32 %v85, %v617
      %619 = vmatprep.mubr.f32.mxu0 0.0
      %620 = vmatmul.mubr.f32.gmra.mrb[0].mxu0 %v147
      %v621 = vpop.f32.mrb[0].mxu0
      %v622 = vadd.f32 %v88, %v621
      %v623 = vpop.f32.mrb[0].mxu0
      %v624 = vadd.f32 %v89, %v623
      %625 = vdwg.mxu0
      %626 = vmatprep.subr.mxu0 %v524
      %627 = vmatpush1.msra.mxu0 %v523
      %628 = vmatprep.subr.mxu0 %v528
      %629 = vmatpush1.msra.mxu0 %v527
      %630 = vmatprep.subr.mxu0 %v532
      %631 = vmatpush1.msra.mxu0 %v531
      %632 = vmatprep.subr.mxu0 %v536
      %633 = vmatpush1.msra.mxu0 %v535
      %634 = vmatprep.subr.mxu0 0.0
      %635 = vmatpush1.msra.mxu0 0.0
      %636 = vmatprep.subr.mxu0 0.0
      %637 = vmatpush1.msra.mxu0 0.0
      %638 = vmatprep.subr.mxu0 0.0
      %639 = vmatpush1.msra.mxu0 0.0
      %640 = vmatprep.subr.mxu0 0.0
      %641 = vmatpush1.msra.mxu0 0.0
      %642 = vmatprep.subr.mxu0 0.0
      %643 = vmatpush1.msra.mxu0 0.0
      %644 = vmatprep.subr.mxu0 0.0
      %645 = vmatpush1.msra.mxu0 0.0
      %646 = vmatprep.subr.mxu0 0.0
      %647 = vmatpush1.msra.mxu0 0.0
      %648 = vmatprep.subr.mxu0 0.0
      %649 = vmatpush1.msra.mxu0 0.0
      %650 = vmatprep.subr.mxu0 0.0
      %651 = vmatpush1.msra.mxu0 0.0
      %652 = vmatprep.subr.mxu0 0.0
      %653 = vmatpush1.msra.mxu0 0.0
      %654 = vmatprep.subr.mxu0 0.0
      %655 = vmatpush1.msra.mxu0 0.0
      %656 = vmatprep.subr.mxu0 0.0
      %657 = vmatpush1.msra.mxu0 0.0
      %658 = vmatprep.subr.mxu0 0.0
      %659 = vmatpush1.msra.mxu0 0.0
      %660 = vmatprep.subr.mxu0 0.0
      %661 = vmatpush1.msra.mxu0 0.0
      %662 = vmatprep.subr.mxu0 0.0
      %663 = vmatpush1.msra.mxu0 0.0
      %664 = vmatprep.subr.mxu0 0.0
      %665 = vmatpush1.msra.mxu0 0.0
      %666 = vmatprep.subr.mxu0 0.0
      %667 = vmatpush1.msra.mxu0 0.0
      %668 = vmatprep.subr.mxu0 0.0
      %669 = vmatpush1.msra.mxu0 0.0
      %670 = vmatprep.subr.mxu0 0.0
      %671 = vmatpush1.msra.mxu0 0.0
      %672 = vmatprep.subr.mxu0 0.0
      %673 = vmatpush1.msra.mxu0 0.0
      %674 = vmatprep.subr.mxu0 0.0
      %675 = vmatpush1.msra.mxu0 0.0
      %676 = vmatprep.subr.mxu0 0.0
      %677 = vmatpush1.msra.mxu0 0.0
      %678 = vmatprep.subr.mxu0 0.0
      %679 = vmatpush1.msra.mxu0 0.0
      %680 = vmatprep.subr.mxu0 0.0
      %681 = vmatpush1.msra.mxu0 0.0
      %682 = vmatprep.subr.mxu0 0.0
      %683 = vmatpush1.msra.mxu0 0.0
      %684 = vmatprep.subr.mxu0 0.0
      %685 = vmatpush1.msra.mxu0 0.0
      %686 = vmatprep.subr.mxu0 0.0
      %687 = vmatpush1.msra.mxu0 0.0
      %688 = vmatprep.subr.mxu0 0.0
      %689 = vmatpush1.msra.mxu0 0.0
      %690 = vmatprep.mubr.f32.mxu0 0.0
      %691 = vmatmul.mubr.f32.gmra.mrb[0].mxu0 %v138
      %v692 = vpop.f32.mrb[0].mxu0
      %v693 = vadd.f32 %v78, %v692
      %v694 = vpop.f32.mrb[0].mxu0
      %v695 = vadd.f32 %v79, %v694
      %696 = vmatprep.mubr.f32.mxu0 0.0
      %697 = vmatmul.mubr.f32.gmra.mrb[0].mxu0 %v141
      %v698 = vpop.f32.mrb[0].mxu0
      %v699 = vadd.f32 %v82, %v698
      %v700 = vpop.f32.mrb[0].mxu0
      %v701 = vadd.f32 %v83, %v700
      %702 = vmatprep.mubr.f32.mxu0 0.0
      %703 = vmatmul.mubr.f32.gmra.mrb[0].mxu0 %v144
      %v704 = vpop.f32.mrb[0].mxu0
      %v705 = vadd.f32 %v86, %v704
      %v706 = vpop.f32.mrb[0].mxu0
      %v707 = vadd.f32 %v87, %v706
      %708 = vmatprep.mubr.f32.mxu0 0.0
      %709 = vmatmul.mubr.f32.gmra.mrb[0].mxu0 %v147
      %v710 = vpop.f32.mrb[0].mxu0
      %v711 = vadd.f32 %v90, %v710
      %v712 = vpop.f32.mrb[0].mxu0
      %v713 = vadd.f32 %v91, %v712
      %714 = vdwg.mxu0
      %v715 = vtanh.pop %v604
      %v716 = vtanh.pop %v606
      %v717 = vtanh.pop %v693
      %v718 = vtanh.pop %v695
      %v719 = vtanh.pop %v610
      %v720 = vtanh.pop %v612
      %v721 = vtanh.pop %v699
      %v722 = vtanh.pop %v701
      %v723 = vtanh.pop %v616
      %v724 = vtanh.pop %v618
      %v725 = vtanh.pop %v705
      %v726 = vtanh.pop %v707
      %v727 = vtanh.pop %v622
      %v728 = vtanh.pop %v624
      %v729 = vtanh.pop %v711
      %v730 = vtanh.pop %v713
      %v731 = vsub.f32 %v715, %v521
      %v732 = vsub.f32 %v716, %v522
      %v733 = vsub.f32 %v717, %v523
      %v734 = vsub.f32 %v718, %v524
      %v735 = vsub.f32 %v719, %v525
      %v736 = vsub.f32 %v720, %v526
      %v737 = vsub.f32 %v721, %v527
      %v738 = vsub.f32 %v722, %v528
      %v739 = vsub.f32 %v723, %v529
      %v740 = vsub.f32 %v724, %v530
      %v741 = vsub.f32 %v725, %v531
      %v742 = vsub.f32 %v726, %v532
      %v743 = vsub.f32 %v727, %v533
      %v744 = vsub.f32 %v728, %v534
      %v745 = vsub.f32 %v729, %v535
      %v746 = vsub.f32 %v730, %v536
      %v747 = vmul.f32 %v731, %v731
      %v748 = vmul.f32 %v732, %v732
      %v749 = vmul.f32 %v733, %v733
      %v750 = vmul.f32 %v734, %v734
      %v751 = vmul.f32 %v735, %v735
      %v752 = vmul.f32 %v736, %v736
      %v753 = vmul.f32 %v737, %v737
      %v754 = vmul.f32 %v738, %v738
      %v755 = vmul.f32 %v739, %v739
      %v756 = vmul.f32 %v740, %v740
      %v757 = vmul.f32 %v741, %v741
      %v758 = vmul.f32 %v742, %v742
      %v759 = vmul.f32 %v743, %v743
      %v760 = vmul.f32 %v744, %v744
      %v761 = vmul.f32 %v745, %v745
      %v762 = vmul.f32 %v746, %v746
      %v763 = vadd.f32 %v747, %v748
      %v764 = vadd.f32 %v763, %v749
      %v765 = vadd.f32 %v764, %v750
      %v766 = vadd.f32 %v765, %v751
      %v767 = vadd.f32 %v766, %v752
      %v768 = vadd.f32 %v767, %v753
      %v769 = vadd.f32 %v768, %v754
      %v770 = vadd.f32 %v769, %v755
      %v771 = vadd.f32 %v770, %v756
      %v772 = vadd.f32 %v771, %v757
      %v773 = vadd.f32 %v772, %v758
      %v774 = vadd.f32 %v773, %v759
      %v775 = vadd.f32 %v774, %v760
      %v776 = vadd.f32 %v775, %v761
      %v777 = vadd.f32 %v776, %v762
      %778 = vadd.xlane.f32.xlu0 %v777
      %v779 = vpop.xlane.xlu0 %778
      %v780 = vrot.slane %v779, 4
      %v781 = vadd.f32 %v779, %v780
      %v782 = vrot.slane %v781, 2
      %v783 = vadd.f32 %v781, %v782
      %v784 = vrot.slane %v783, 1
      %v785 = vadd.f32 %v783, %v784
      %s786 = vtos %v785
      %v787 = vmul.f32 %v715, %v715
      %v788 = vmul.f32 %v716, %v716
      %v789 = vmul.f32 %v717, %v717
      %v790 = vmul.f32 %v718, %v718
      %v791 = vmul.f32 %v719, %v719
      %v792 = vmul.f32 %v720, %v720
      %v793 = vmul.f32 %v721, %v721
      %v794 = vmul.f32 %v722, %v722
      %v795 = vmul.f32 %v723, %v723
      %v796 = vmul.f32 %v724, %v724
      %v797 = vmul.f32 %v725, %v725
      %v798 = vmul.f32 %v726, %v726
      %v799 = vmul.f32 %v727, %v727
      %v800 = vmul.f32 %v728, %v728
      %v801 = vmul.f32 %v729, %v729
      %v802 = vmul.f32 %v730, %v730
      %v803 = vadd.f32 %v787, %v788
      %v804 = vadd.f32 %v803, %v789
      %v805 = vadd.f32 %v804, %v790
      %v806 = vadd.f32 %v805, %v791
      %v807 = vadd.f32 %v806, %v792
      %v808 = vadd.f32 %v807, %v793
      %v809 = vadd.f32 %v808, %v794
      %v810 = vadd.f32 %v809, %v795
      %v811 = vadd.f32 %v810, %v796
      %v812 = vadd.f32 %v811, %v797
      %v813 = vadd.f32 %v812, %v798
      %v814 = vadd.f32 %v813, %v799
      %v815 = vadd.f32 %v814, %v800
      %v816 = vadd.f32 %v815, %v801
      %v817 = vadd.f32 %v816, %v802
      %818 = vadd.xlane.f32.xlu0 %v817
      %v819 = vpop.xlane.xlu0 %818
      %v820 = vrot.slane %v819, 4
      %v821 = vadd.f32 %v819, %v820
      %v822 = vrot.slane %v821, 2
      %v823 = vadd.f32 %v821, %v822
      %v824 = vrot.slane %v823, 1
      %v825 = vadd.f32 %v823, %v824
      %s826 = vtos %v825
      %s827 = sadd.s32 %s127, 3
    $region22: #{tpu_custom_call.1} parent=1 // loop_footer
      _
    $region23: #{tpu_custom_call.1} parent=1 // loop_footer_branch
      %108 = sbr.rel target = $region19
    $region24: #{tpu_custom_call.1} parent=1 // loop_exit
      _
    %vm828 = vcmask 261120
    %v830 = vsel %vm828, %v32, 0
    %v833 = vsel %vm828, %v33, 0
    %v836 = vsel %vm828, %v34, 0
    %v839 = vsel %vm828, %v35, 0
    %841 = vmatprep.subr.mxu0 %v110
    %842 = vmatpush1.msra.mxu0 %v109
    %843 = vmatprep.subr.mxu0 %v114
    %844 = vmatpush1.msra.mxu0 %v113
    %845 = vmatprep.subr.mxu0 %v118
    %846 = vmatpush1.msra.mxu0 %v117
    %847 = vmatprep.subr.mxu0 %v122
    %848 = vmatpush1.msra.mxu0 %v121
    %849 = vmatprep.subr.mxu0 0.0
    %850 = vmatpush1.msra.mxu0 0.0
    %851 = vmatprep.subr.mxu0 0.0
    %852 = vmatpush1.msra.mxu0 0.0
    %853 = vmatprep.subr.mxu0 0.0
    %854 = vmatpush1.msra.mxu0 0.0
    %855 = vmatprep.subr.mxu0 0.0
    %856 = vmatpush1.msra.mxu0 0.0
    %857 = vmatprep.subr.mxu0 0.0
    %858 = vmatpush1.msra.mxu0 0.0
    %859 = vmatprep.subr.mxu0 0.0
    %860 = vmatpush1.msra.mxu0 0.0
    %861 = vmatprep.subr.mxu0 0.0
    %862 = vmatpush1.msra.mxu0 0.0
    %863 = vmatprep.subr.mxu0 0.0
    %864 = vmatpush1.msra.mxu0 0.0
    %865 = vmatprep.subr.mxu0 0.0
    %866 = vmatpush1.msra.mxu0 0.0
    %867 = vmatprep.subr.mxu0 0.0
    %868 = vmatpush1.msra.mxu0 0.0
    %869 = vmatprep.subr.mxu0 0.0
    %870 = vmatpush1.msra.mxu0 0.0
    %871 = vmatprep.subr.mxu0 0.0
    %872 = vmatpush1.msra.mxu0 0.0
    %873 = vmatprep.subr.mxu0 0.0
    %874 = vmatpush1.msra.mxu0 0.0
    %875 = vmatprep.subr.mxu0 0.0
    %876 = vmatpush1.msra.mxu0 0.0
    %877 = vmatprep.subr.mxu0 0.0
    %878 = vmatpush1.msra.mxu0 0.0
    %879 = vmatprep.subr.mxu0 0.0
    %880 = vmatpush1.msra.mxu0 0.0
    %881 = vmatprep.subr.mxu0 0.0
    %882 = vmatpush1.msra.mxu0 0.0
    %883 = vmatprep.subr.mxu0 0.0
    %884 = vmatpush1.msra.mxu0 0.0
    %885 = vmatprep.subr.mxu0 0.0
    %886 = vmatpush1.msra.mxu0 0.0
    %887 = vmatprep.subr.mxu0 0.0
    %888 = vmatpush1.msra.mxu0 0.0
    %889 = vmatprep.subr.mxu0 0.0
    %890 = vmatpush1.msra.mxu0 0.0
    %891 = vmatprep.subr.mxu0 0.0
    %892 = vmatpush1.msra.mxu0 0.0
    %893 = vmatprep.subr.mxu0 0.0
    %894 = vmatpush1.msra.mxu0 0.0
    %895 = vmatprep.subr.mxu0 0.0
    %896 = vmatpush1.msra.mxu0 0.0
    %897 = vmatprep.subr.mxu0 0.0
    %898 = vmatpush1.msra.mxu0 0.0
    %899 = vmatprep.subr.mxu0 0.0
    %900 = vmatpush1.msra.mxu0 0.0
    %901 = vmatprep.subr.mxu0 0.0
    %902 = vmatpush1.msra.mxu0 0.0
    %903 = vmatprep.subr.mxu0 0.0
    %904 = vmatpush1.msra.mxu0 0.0
    %905 = vmatprep.mubr.f32.mxu0 0.0
    %906 = vmatmul.mubr.f32.gmra.mrb[0].mxu0 %v830
    %v907 = vpop.f32.mrb[0].mxu0
    %v908 = vadd.f32 %v76, %v907
    %v909 = vpop.f32.mrb[0].mxu0
    %v910 = vadd.f32 %v77, %v909
    %911 = vmatprep.mubr.f32.mxu0 0.0
    %912 = vmatmul.mubr.f32.gmra.mrb[0].mxu0 %v833
    %v913 = vpop.f32.mrb[0].mxu0
    %v914 = vadd.f32 %v80, %v913
    %v915 = vpop.f32.mrb[0].mxu0
    %v916 = vadd.f32 %v81, %v915
    %917 = vmatprep.mubr.f32.mxu0 0.0
    %918 = vmatmul.mubr.f32.gmra.mrb[0].mxu0 %v836
    %v919 = vpop.f32.mrb[0].mxu0
    %v920 = vadd.f32 %v84, %v919
    %v921 = vpop.f32.mrb[0].mxu0
    %v922 = vadd.f32 %v85, %v921
    %923 = vmatprep.mubr.f32.mxu0 0.0
    %924 = vmatmul.mubr.f32.gmra.mrb[0].mxu0 %v839
    %v925 = vpop.f32.mrb[0].mxu0
    %v926 = vadd.f32 %v88, %v925
    %v927 = vpop.f32.mrb[0].mxu0
    %v928 = vadd.f32 %v89, %v927
    %929 = vdwg.mxu0
    %930 = vmatprep.subr.mxu0 %v112
    %931 = vmatpush1.msra.mxu0 %v111
    %932 = vmatprep.subr.mxu0 %v116
    %933 = vmatpush1.msra.mxu0 %v115
    %934 = vmatprep.subr.mxu0 %v120
    %935 = vmatpush1.msra.mxu0 %v119
    %936 = vmatprep.subr.mxu0 %v124
    %937 = vmatpush1.msra.mxu0 %v123
    %938 = vmatprep.subr.mxu0 0.0
    %939 = vmatpush1.msra.mxu0 0.0
    %940 = vmatprep.subr.mxu0 0.0
    %941 = vmatpush1.msra.mxu0 0.0
    %942 = vmatprep.subr.mxu0 0.0
    %943 = vmatpush1.msra.mxu0 0.0
    %944 = vmatprep.subr.mxu0 0.0
    %945 = vmatpush1.msra.mxu0 0.0
    %946 = vmatprep.subr.mxu0 0.0
    %947 = vmatpush1.msra.mxu0 0.0
    %948 = vmatprep.subr.mxu0 0.0
    %949 = vmatpush1.msra.mxu0 0.0
    %950 = vmatprep.subr.mxu0 0.0
    %951 = vmatpush1.msra.mxu0 0.0
    %952 = vmatprep.subr.mxu0 0.0
    %953 = vmatpush1.msra.mxu0 0.0
    %954 = vmatprep.subr.mxu0 0.0
    %955 = vmatpush1.msra.mxu0 0.0
    %956 = vmatprep.subr.mxu0 0.0
    %957 = vmatpush1.msra.mxu0 0.0
    %958 = vmatprep.subr.mxu0 0.0
    %959 = vmatpush1.msra.mxu0 0.0
    %960 = vmatprep.subr.mxu0 0.0
    %961 = vmatpush1.msra.mxu0 0.0
    %962 = vmatprep.subr.mxu0 0.0
    %963 = vmatpush1.msra.mxu0 0.0
    %964 = vmatprep.subr.mxu0 0.0
    %965 = vmatpush1.msra.mxu0 0.0
    %966 = vmatprep.subr.mxu0 0.0
    %967 = vmatpush1.msra.mxu0 0.0
    %968 = vmatprep.subr.mxu0 0.0
    %969 = vmatpush1.msra.mxu0 0.0
    %970 = vmatprep.subr.mxu0 0.0
    %971 = vmatpush1.msra.mxu0 0.0
    %972 = vmatprep.subr.mxu0 0.0
    %973 = vmatpush1.msra.mxu0 0.0
    %974 = vmatprep.subr.mxu0 0.0
    %975 = vmatpush1.msra.mxu0 0.0
    %976 = vmatprep.subr.mxu0 0.0
    %977 = vmatpush1.msra.mxu0 0.0
    %978 = vmatprep.subr.mxu0 0.0
    %979 = vmatpush1.msra.mxu0 0.0
    %980 = vmatprep.subr.mxu0 0.0
    %981 = vmatpush1.msra.mxu0 0.0
    %982 = vmatprep.subr.mxu0 0.0
    %983 = vmatpush1.msra.mxu0 0.0
    %984 = vmatprep.subr.mxu0 0.0
    %985 = vmatpush1.msra.mxu0 0.0
    %986 = vmatprep.subr.mxu0 0.0
    %987 = vmatpush1.msra.mxu0 0.0
    %988 = vmatprep.subr.mxu0 0.0
    %989 = vmatpush1.msra.mxu0 0.0
    %990 = vmatprep.subr.mxu0 0.0
    %991 = vmatpush1.msra.mxu0 0.0
    %992 = vmatprep.subr.mxu0 0.0
    %993 = vmatpush1.msra.mxu0 0.0
    %994 = vmatprep.mubr.f32.mxu0 0.0
    %995 = vmatmul.mubr.f32.gmra.mrb[0].mxu0 %v830
    %v996 = vpop.f32.mrb[0].mxu0
    %v997 = vadd.f32 %v78, %v996
    %v998 = vpop.f32.mrb[0].mxu0
    %v999 = vadd.f32 %v79, %v998
    %1000 = vmatprep.mubr.f32.mxu0 0.0
    %1001 = vmatmul.mubr.f32.gmra.mrb[0].mxu0 %v833
    %v1002 = vpop.f32.mrb[0].mxu0
    %v1003 = vadd.f32 %v82, %v1002
    %v1004 = vpop.f32.mrb[0].mxu0
    %v1005 = vadd.f32 %v83, %v1004
    %1006 = vmatprep.mubr.f32.mxu0 0.0
    %1007 = vmatmul.mubr.f32.gmra.mrb[0].mxu0 %v836
    %v1008 = vpop.f32.mrb[0].mxu0
    %v1009 = vadd.f32 %v86, %v1008
    %v1010 = vpop.f32.mrb[0].mxu0
    %v1011 = vadd.f32 %v87, %v1010
    %1012 = vmatprep.mubr.f32.mxu0 0.0
    %1013 = vmatmul.mubr.f32.gmra.mrb[0].mxu0 %v839
    %v1014 = vpop.f32.mrb[0].mxu0
    %v1015 = vadd.f32 %v90, %v1014
    %v1016 = vpop.f32.mrb[0].mxu0
    %v1017 = vadd.f32 %v91, %v1016
    %1018 = vdwg.mxu0
    %v1019 = vtanh.pop %v908
    %v1020 = vtanh.pop %v910
    %v1021 = vtanh.pop %v997
    %v1022 = vtanh.pop %v999
    %v1023 = vtanh.pop %v914
    %v1024 = vtanh.pop %v916
    %v1025 = vtanh.pop %v1003
    %v1026 = vtanh.pop %v1005
    %v1027 = vtanh.pop %v920
    %v1028 = vtanh.pop %v922
    %v1029 = vtanh.pop %v1009
    %v1030 = vtanh.pop %v1011
    %v1031 = vtanh.pop %v926
    %v1032 = vtanh.pop %v928
    %v1033 = vtanh.pop %v1015
    %v1034 = vtanh.pop %v1017
    %1035 = vst [vmem:[#allocation6] sm:$0xff] %v1019
    %1036 = vst [vmem:[#allocation6 + $0x8] sm:$0xff] %v1020
    %1037 = vst [vmem:[#allocation6 + $0x10] sm:$0xff] %v1021
    %1038 = vst [vmem:[#allocation6 + $0x18] sm:$0xff] %v1022
    %1039 = vst [vmem:[#allocation6 + $0x20] sm:$0xff] %v1023
    %1040 = vst [vmem:[#allocation6 + $0x28] sm:$0xff] %v1024
    %1041 = vst [vmem:[#allocation6 + $0x30] sm:$0xff] %v1025
    %1042 = vst [vmem:[#allocation6 + $0x38] sm:$0xff] %v1026
    %1043 = vst [vmem:[#allocation6 + $0x40] sm:$0xff] %v1027
    %1044 = vst [vmem:[#allocation6 + $0x48] sm:$0xff] %v1028
    %1045 = vst [vmem:[#allocation6 + $0x50] sm:$0xff] %v1029
    %1046 = vst [vmem:[#allocation6 + $0x58] sm:$0xff] %v1030
    %1047 = vst [vmem:[#allocation6 + $0x60] sm:$0xff] %v1031
    %1048 = vst [vmem:[#allocation6 + $0x68] sm:$0xff] %v1032
    %1049 = vst [vmem:[#allocation6 + $0x70] sm:$0xff] %v1033
    %1050 = vst [vmem:[#allocation6 + $0x78] sm:$0xff] %v1034
    %s1051 = scalar_lea.smem [#allocation7], 0
    %1052 = sst [smem:[%s1051]] %s125
    %s1053 = scalar_lea.smem [#allocation7], 1
    %1054 = sst [smem:[%s1053]] %s126
    // Predicated region
    $region25: #{tpu_custom_call.1} parent=1 // pred_check
      _
    $region26: #{tpu_custom_call.1} parent=1 // pred_check_branch
      %1056 = sbr.rel (0) target = $region28
    $region27: #{tpu_custom_call.1} parent=1 // pred_region
      %s1058 = ssub.s32 2048, 2048
      %1059 = vsyncadd [#allocation4], %s1058
      %s1060 = sshll.u32 [#allocation6], 4
      %s1061 = int_to_ptr.vmem [resolvable:$true] %s1060
      %1066 = dma.vmem_to_hbm [thread:$0]  %s1061, 2048, %s3, [#allocation4], 512, 512, 32
    $region28: #{tpu_custom_call.1} parent=1 // pred_fallthru
      _
    // Predicated region
    $region29: #{tpu_custom_call.1} parent=1 // pred_check
      _
    $region30: #{tpu_custom_call.1} parent=1 // pred_check_branch
      %1068 = sbr.rel (0) target = $region32
    $region31: #{tpu_custom_call.1} parent=1 // pred_region
      %s1070 = ssub.s32 16, 16
      %1071 = vsyncadd [#allocation5], %s1070
      %1074 = dma.smem_to_hbm [#allocation7], 16, %s4, [#allocation5]
    $region32: #{tpu_custom_call.1} parent=1 // pred_fallthru
      _
    // Predicated region
    $region33: #{tpu_custom_call.1} parent=1 // pred_check
      _
    $region34: #{tpu_custom_call.1} parent=1 // pred_check_branch
      %1076 = sbr.rel (0) target = $region36
    $region35: #{tpu_custom_call.1} parent=1 // pred_region
      %1077 = dma.done [#allocation4], 2048
    $region36: #{tpu_custom_call.1} parent=1 // pred_fallthru
      _
    // Predicated region
    $region37: #{tpu_custom_call.1} parent=1 // pred_check
      _
    $region38: #{tpu_custom_call.1} parent=1 // pred_check_branch
      %1079 = sbr.rel (0) target = $region40
    $region39: #{tpu_custom_call.1} parent=1 // pred_region
      %1080 = dma.done [#allocation5], 16
    $region40: #{tpu_custom_call.1} parent=1 // pred_fallthru
      _
    %1081 = sfence
    %1082 = vsyncpa [#allocation3], 1
    %1083 = vsyncpa [#allocation4], 1
    %1084 = vsyncpa [#allocation5], 1

</llo_original>
